<compile_context>
chip_gen: v7x
topology: tpu7x:2x2x1
jax: 0.10.0
libtpu: 0.0.40
codegen_flags: <defaults>
</compile_context>

<pallas_src>
import functools
import math

import jax
import jax.numpy as jnp
from jax.experimental import pallas as pl
from jax.experimental.pallas import tpu as pltpu


def _disc_kernel(x_ref, w_ref, o_ref, acc_ref, *,
                 n_frames, frame_tile, blocks_per_half, inv_n):
    """Grid = (2 parallel halves, reduction steps per half).

    x_ref  : (B, frame_tile, K)  chunk of flattened frames (native dtype)
    w_ref  : (1, K)              Linear weight (torch layout (1, K)), f32
    o_ref  : (1, B, 1)           this half's partial mean (no bias)
    acc_ref: (B, K) f32          running sum of frames owned by this half
    """
    p = pl.program_id(0)          # which half (parallel, v7x megacore)
    i = pl.program_id(1)          # reduction step within the half (arbitrary)

    @pl.when(i == 0)
    def _():
        acc_ref[...] = jnp.zeros_like(acc_ref)

    # Logical first frame of this (p, i) block. Rows past N (ragged tail) and
    # whole blocks past the last real block (clamped duplicates from the
    # index_map) are masked to zero so they contribute nothing.
    frame0 = (p * blocks_per_half + i) * frame_tile
    tn = x_ref.shape[1]
    fidx = jax.lax.broadcasted_iota(jnp.int32, (1, tn, 1), 1) + frame0

    x = x_ref[...].astype(jnp.float32)              # upcast per block in-kernel
    x = jnp.where(fidx < n_frames, x, 0.0)          # mask ragged / duplicate rows
    acc_ref[...] += jnp.sum(x, axis=1)              # (B, K) frame-sum only

    @pl.when(i == pl.num_programs(1) - 1)
    def _():
        # Single lane-reduce dot against w, scaled by 1/N, only in the epilogue.
        w = w_ref[...]                                              # (1, K)
        partial = jnp.sum(acc_ref[...] * w, axis=-1, keepdims=True) * inv_n
        o_ref[...] = partial[None].astype(o_ref.dtype)              # (1, B, 1)


def video_discriminator_forward(params, x, *, target_block_bytes=4 << 20):
    """x: (B, N, C, H, W) -> scores (B, 1).

    Equivalent to: Linear(C*H*W, 1)(x.reshape(B, N, -1)).mean(axis=1)
    """
    B, N, C, H, W = x.shape
    K = C * H * W
    x2 = x.reshape(B, N, K)                         # no copy, native dtype
    w = params["w"].reshape(1, K).astype(jnp.float32)
    b = params["b"].reshape(1, 1).astype(jnp.float32)

    # VMEM-budgeted frame tile: one x block ~ target_block_bytes (double
    # buffered -> ~2x that), sublane multiple depends on dtype packing.
    itemsize = x2.dtype.itemsize
    mult = 8 if itemsize >= 4 else (16 if itemsize == 2 else 32)
    ft = target_block_bytes // max(1, B * K * itemsize)
    ft = max(mult, (ft // mult) * mult)
    ft = min(ft, 4096)
    if N <= ft:
        frame_tile = N                              # full-dim block is legal
        total_blocks = 1
    else:
        frame_tile = ft
        total_blocks = pl.cdiv(N, frame_tile)       # ragged tail masked in-kernel
    blocks_per_half = pl.cdiv(total_blocks, 2)      # 2-way split (v7x megacore)

    kern = functools.partial(
        _disc_kernel, n_frames=N, frame_tile=frame_tile,
        blocks_per_half=blocks_per_half, inv_n=1.0 / N)

    def x_map(p, i):
        # Clamp so a duplicated (fully-masked) block never indexes out of range.
        return (0, jnp.minimum(p * blocks_per_half + i, total_blocks - 1), 0)

    partials = pl.pallas_call(
        kern,
        out_shape=jax.ShapeDtypeStruct((2, B, 1), jnp.float32),
        grid_spec=pltpu.PrefetchScalarGridSpec(
            num_scalar_prefetch=0,
            grid=(2, blocks_per_half),
            in_specs=[
                pl.BlockSpec((B, frame_tile, K), x_map),
                pl.BlockSpec((1, K), lambda p, i: (0, 0)),
            ],
            out_specs=pl.BlockSpec((1, B, 1), lambda p, i: (p, 0, 0)),
            scratch_shapes=[pltpu.VMEM((B, K), jnp.float32)],
        ),
        compiler_params=pltpu.CompilerParams(
            dimension_semantics=("parallel", "arbitrary")),
    )(x2, w)

    # mean(dot(x_f, w) + b) == mean(dot(x_f, w)) + b ; bias added once here.
    return partials.sum(axis=0) + b                 # (B, 1)


def init_params(key, k_in):
    kw, kb = jax.random.split(key, 2)
    scale = 1.0 / math.sqrt(k_in)
    return {
        "w": scale * jax.random.normal(kw, (1, k_in), jnp.float32),  # Linear weight
        "b": scale * jax.random.normal(kb, (1,), jnp.float32),       # Linear bias
    }


def _ref_forward(params, x):
    B, N = x.shape[0], x.shape[1]
    K = x.shape[2] * x.shape[3] * x.shape[4]
    xf = x.reshape(B, N, K).astype(jnp.float32)
    return (xf @ params["w"].reshape(K, 1) + params["b"].reshape(1, 1)).mean(axis=1)


if __name__ == "__main__":
    key = jax.random.PRNGKey(0)
    pkey, xkey, xkey2 = jax.random.split(key, 3)

    # Frames are (3, 16, 16) per the module (linear_predictor = Linear(16*16*3, 1)).
    B, N, C, H, W = 2, 8, 3, 16, 16
    K = C * H * W
    params = init_params(pkey, K)

    # Case 1: everything fits in a single frame block.
    x = jax.random.normal(xkey, (B, N, C, H, W), jnp.float32)
    fwd = jax.jit(lambda xx: video_discriminator_forward(params, xx))
    scores = jax.block_until_ready(fwd(x))
    ref = _ref_forward(params, x)
    assert scores.shape == (B, 1)
    assert jnp.allclose(scores, ref, atol=1e-5, rtol=1e-5), (scores, ref)

    # Case 2: force small tiles to exercise the multi-block / ragged-tail /
    # clamped-duplicate masking path (odd number of blocks across the 2 halves).
    N2 = 37
    x2 = jax.random.normal(xkey2, (B, N2, C, H, W), jnp.float32)
    fwd_small = jax.jit(lambda xx: video_discriminator_forward(
        params, xx, target_block_bytes=96 * 1024))
    scores2 = jax.block_until_ready(fwd_small(x2))
    ref2 = _ref_forward(params, x2)
    assert scores2.shape == (B, 1)
    assert jnp.allclose(scores2, ref2, atol=1e-5, rtol=1e-5), (scores2, ref2)

    print("KERNEL_OK")
</pallas_src>

<mosaic_0001>
module attributes {stable_mosaic.version = 11 : i64} {
  func.func @_disc_kernel(%arg0: i32, %arg1: i32, %arg2: memref<2x8x768xf32, #tpu.memory_space<vmem>>, %arg3: memref<1x768xf32, #tpu.memory_space<vmem>>, %arg4: memref<1x2x1xf32, #tpu.memory_space<vmem>>, %arg5: memref<2x768xf32, #tpu.memory_space<vmem>>) attributes {dimension_semantics = [#tpu.dimension_semantics<parallel>, #tpu.dimension_semantics<arbitrary>], iteration_bounds = array<i64: 2, 1>, scalar_prefetch = 0 : i64, scratch_operands = 1 : i64, tpu.core_type = #tpu.core_type<tc>, window_params = [{transform_indices = @transform_0, window_bounds = array<i64: 2, 8, 768>}, {pipeline_mode = #tpu.pipeline_mode<synchronous>, transform_indices = @transform_1, window_bounds = array<i64: 1, 768>}, {transform_indices = @transform_2, window_bounds = array<i64: 1, 2, 1>}]} {
    %c0_i32 = arith.constant 0 : i32
    %0 = arith.cmpi eq, %arg1, %c0_i32 : i32
    %1 = arith.extui %0 : i1 to i32
    %c0_i32_0 = arith.constant 0 : i32
    %2 = arith.cmpi ne, %1, %c0_i32_0 : i32
    scf.if %2 {
      %cst_11 = arith.constant 0.000000e+00 : f32
      %23 = vector.broadcast %cst_11 : f32 to vector<2x768xf32>
      %c0_12 = arith.constant 0 : index
      %c0_13 = arith.constant 0 : index
      %24 = vector.load %arg5[%c0_12, %c0_13] : memref<2x768xf32, #tpu.memory_space<vmem>>, vector<2x768xf32>
      tpu.vector_store %arg5[%c0_12, %c0_13], %23 {strides = array<i32>} : memref<2x768xf32, #tpu.memory_space<vmem>>, vector<2x768xf32>,
    } else {
    }
    %c1_i32 = arith.constant 1 : i32
    %3 = arith.muli %arg0, %c1_i32 : i32
    %4 = arith.addi %3, %arg1 : i32
    %c8_i32 = arith.constant 8 : i32
    %5 = arith.muli %4, %c8_i32 : i32
    %6 = tpu.iota {dimensions = array<i32: 1>} : vector<1x8x1xi32>
    %7 = vector.broadcast %5 : i32 to vector<1x8x1xi32>
    %8 = arith.addi %6, %7 : vector<1x8x1xi32>
    %c0 = arith.constant 0 : index
    %c0_1 = arith.constant 0 : index
    %c0_2 = arith.constant 0 : index
    %9 = vector.load %arg2[%c0, %c0_1, %c0_2] : memref<2x8x768xf32, #tpu.memory_space<vmem>>, vector<2x8x768xf32>
    %c8_i32_3 = arith.constant 8 : i32
    %10 = vector.broadcast %c8_i32_3 : i32 to vector<1x8x1xi32>
    %11 = arith.cmpi slt, %8, %10 : vector<1x8x1xi32>
    %cst = arith.constant 0.000000e+00 : f32
    %12 = vector.shape_cast %11 : vector<1x8x1xi1> to vector<1x8x1xi1>
    %13 = vector.broadcast %12 : vector<1x8x1xi1> to vector<2x8x768xi1>
    %14 = vector.broadcast %cst : f32 to vector<2x8x768xf32>
    %15 = arith.select %13, %9, %14 : vector<2x8x768xi1>, vector<2x8x768xf32>
    %c0_4 = arith.constant 0 : index
    %c0_5 = arith.constant 0 : index
    %16 = vector.load %arg5[%c0_4, %c0_5] : memref<2x768xf32, #tpu.memory_space<vmem>>, vector<2x768xf32>
    %cst_6 = arith.constant dense<0.000000e+00> : vector<2x768xf32>
    %17 = vector.multi_reduction <add>, %15, %cst_6 [1] : vector<2x8x768xf32> to vector<2x768xf32>
    %18 = arith.addf %16, %17 : vector<2x768xf32>
    %c0_7 = arith.constant 0 : index
    %c0_8 = arith.constant 0 : index
    %19 = vector.load %arg5[%c0_7, %c0_8] : memref<2x768xf32, #tpu.memory_space<vmem>>, vector<2x768xf32>
    tpu.vector_store %arg5[%c0_7, %c0_8], %18 {strides = array<i32>} : memref<2x768xf32, #tpu.memory_space<vmem>>, vector<2x768xf32>,
    %c0_i32_9 = arith.constant 0 : i32
    %20 = arith.cmpi eq, %arg1, %c0_i32_9 : i32
    %21 = arith.extui %20 : i1 to i32
    %c0_i32_10 = arith.constant 0 : i32
    %22 = arith.cmpi ne, %21, %c0_i32_10 : i32
    scf.if %22 {
      %c0_11 = arith.constant 0 : index
      %c0_12 = arith.constant 0 : index
      %23 = vector.load %arg3[%c0_11, %c0_12] : memref<1x768xf32, #tpu.memory_space<vmem>>, vector<1x768xf32>
      %c0_13 = arith.constant 0 : index
      %c0_14 = arith.constant 0 : index
      %24 = vector.load %arg5[%c0_13, %c0_14] : memref<2x768xf32, #tpu.memory_space<vmem>>, vector<2x768xf32>
      %25 = vector.broadcast %23 : vector<1x768xf32> to vector<2x768xf32>
      %26 = arith.mulf %24, %25 : vector<2x768xf32>
      %cst_15 = arith.constant dense<0.000000e+00> : vector<2xf32>
      %27 = vector.multi_reduction <add>, %26, %cst_15 [1] : vector<2x768xf32> to vector<2xf32>
      %28 = vector.shape_cast %27 : vector<2xf32> to vector<2x1xf32>
      %cst_16 = arith.constant 1.250000e-01 : f32
      %29 = vector.broadcast %cst_16 : f32 to vector<2x1xf32>
      %30 = arith.mulf %28, %29 : vector<2x1xf32>
      %31 = vector.shape_cast %30 : vector<2x1xf32> to vector<1x2x1xf32>
      %c0_17 = arith.constant 0 : index
      %c0_18 = arith.constant 0 : index
      %c0_19 = arith.constant 0 : index
      %32 = vector.load %arg4[%c0_17, %c0_18, %c0_19] : memref<1x2x1xf32, #tpu.memory_space<vmem>>, vector<1x2x1xf32>
      tpu.vector_store %arg4[%c0_17, %c0_18, %c0_19], %31 {strides = array<i32>} : memref<1x2x1xf32, #tpu.memory_space<vmem>>, vector<1x2x1xf32>,
    } else {
    }
    return
  }
  func.func @transform_0(%arg0: i32, %arg1: i32) -> (i32, i32, i32) {
    %c1_i32 = arith.constant 1 : i32
    %0 = arith.muli %arg0, %c1_i32 : i32
    %1 = arith.addi %0, %arg1 : i32
    %c0_i32 = arith.constant 0 : i32
    %2 = arith.minsi %1, %c0_i32 : i32
    %c0_i32_0 = arith.constant 0 : i32
    %c0_i32_1 = arith.constant 0 : i32
    %c0_i32_2 = arith.constant 0 : i32
    return %c0_i32_0, %2, %c0_i32_1 : i32, i32, i32
  }
  func.func @transform_1(%arg0: i32, %arg1: i32) -> (i32, i32) {
    %c0_i32 = arith.constant 0 : i32
    %c0_i32_0 = arith.constant 0 : i32
    %c0_i32_1 = arith.constant 0 : i32
    return %c0_i32, %c0_i32_0 : i32, i32
  }
  func.func @transform_2(%arg0: i32, %arg1: i32) -> (i32, i32, i32) {
    %c0_i32 = arith.constant 0 : i32
    %c0_i32_0 = arith.constant 0 : i32
    %c0_i32_1 = arith.constant 0 : i32
    return %arg0, %c0_i32, %c0_i32_0 : i32, i32, i32
  }
}

</mosaic_0001>

<llo_original>
// kernel: _lambda_.1
$region0: #{_lambda_.1}
  #allocation0 [shape = 'u32[]', space=smem, size = 0x4, offset = 0x4, fixed_abs, tag = 'smem constant byte address 0x4 - core index']
  #allocation1 [shape = 'u32[144,128]{1,0:T(1,128)}', space=vmem, size = 0x12000, scoped, tag = 'internal scratch']
  #allocation2 [shape = 'f32[2,768]{1,0:T(2,128)}', space=vmem, size = 0x1800, scoped, tag = 'scratch operand']
  %s0 = inlined_call_operand.vmem [shape: f32[2,8,768], index: 0, kind: input, shape index: {}]
  %s1 = inlined_call_operand.vmem [shape: f32[1,768], index: 1, kind: input, shape index: {}]
  %s2 = inlined_call_operand.vmem [shape: f32[2,2,1], index: 2, kind: output, shape index: {}]
  %s3 = sld [smem:[#allocation0]]
  $region49: #{_lambda_.1} parent=0
    _
  %s5 = ssub.s32 1, %s3
  %s6 = scalar_select 0, %s5, %s3
  loop: start=0, step=1, limit=4
  $region2: #{_lambda_.1} parent=0 // loop_pre_header
    _
  $region3: #{_lambda_.1} parent=0 // loop_header
    %s8 = sphi 0, %s12
    %p9 = scmp.ge.s32.totalorder %s8, 4
    %s15 = sphi 0, %s27
    %s16 = sphi 0, %s23
    %s17 = sphi 0, %s15
    %s18 = sphi 0, %s16
    %s19 = sphi 0, %s17
    %s20 = sphi 0, %s18
    %s36 = sphi 0, %s38
    %s39 = sphi 0, %s36
    %s40 = sphi 0, %s39
    %s56 = sphi 0, %s40
    %s60 = sphi 0, %s60
    %s62 = sphi 0, %s60
    %s63 = sphi 0, %s62
    %s77 = sphi 0, %s63
    %s83 = sphi 0, %s85
    %s86 = sphi 0, %s83
    %s87 = sphi 0, %s86
    %s103 = sphi 0, %s87
  $region4: #{_lambda_.1} parent=0 // loop_header_branch
    %11 = sbr.rel (%p9) target = $region8
  $region5: #{_lambda_.1} parent=0 // loop_body
    %s13 = ssub.s32 %s8, 1
    %s14 = ssub.s32 %s8, 2
    %s21 = sadd.s32 1, %s16
    %p22 = scmp.ge.s32.totalorder %s21, 1
    %s23 = scalar_select %p22, 0, %s21
    %s24 = sadd.s32 1, %s15
    %s25 = scalar_select %p22, %s24, %s15
    %p26 = scmp.ge.s32.totalorder %s25, 2
    %s27 = scalar_select %p26, 0, %s25
    %s28 = sadd.s32 %s15, %s16
    %p29 = scmp.lt.s32.totalorder %s28, 0
    %s30 = scalar_select %p29, %s28, 0
    %s31 = sadd.s32 %s27, %s23
    %p32 = scmp.lt.s32.totalorder %s31, 0
    %s33 = scalar_select %p32, %s31, 0
    %s34 = ssub.s32 %s30, %s33
    %p35 = scmp.eq.s32.totalorder %s34, 0
    %s37 = sadd.s32 %s36, 1
    %s38 = scalar_select %p35, %s36, %s37
    %p41 = pneg %p35
    %p42 = scmp.eq.s32.totalorder %s8, 1
    %p43 = por %p41, %p42
    %p44 = scmp.ne.s32.totalorder %s36, %s39
    %p45 = scmp.eq.s32.totalorder %s8, 0
    %p46 = por %p44, %p45
    %p47 = scmp.ne.s32.totalorder %s36, %s39
    %p48 = scmp.eq.s32.totalorder %s13, 1
    %p49 = por %p47, %p48
    %p50 = scmp.ne.s32.totalorder %s39, %s40
    %p51 = scmp.eq.s32.totalorder %s13, 0
    %p52 = por %p50, %p51
    %p53 = scmp.ne.s32.totalorder %s39, %s40
    %p54 = scmp.eq.s32.totalorder %s14, 1
    %p55 = por %p53, %p54
    %p57 = scmp.ne.s32.totalorder %s40, %s56
    %p58 = scmp.eq.s32.totalorder %s14, 0
    %p59 = por %p57, %p58
    %s61 = sadd.s32 %s60, 1
    %p64 = scmp.eq.s32.totalorder %s8, 1
    %p65 = scmp.ne.s32.totalorder %s60, %s62
    %p66 = scmp.eq.s32.totalorder %s8, 0
    %p67 = por %p65, %p66
    %p68 = scmp.ne.s32.totalorder %s60, %s62
    %p69 = scmp.eq.s32.totalorder %s13, 1
    %p70 = por %p68, %p69
    %p71 = scmp.ne.s32.totalorder %s62, %s63
    %p72 = scmp.eq.s32.totalorder %s13, 0
    %p73 = por %p71, %p72
    %p74 = scmp.ne.s32.totalorder %s62, %s63
    %p75 = scmp.eq.s32.totalorder %s14, 1
    %p76 = por %p74, %p75
    %p78 = scmp.ne.s32.totalorder %s63, %s77
    %p79 = scmp.eq.s32.totalorder %s14, 0
    %p80 = por %p78, %p79
    %s81 = ssub.s32 %s15, %s27
    %p82 = scmp.eq.s32.totalorder %s81, 0
    %s84 = sadd.s32 %s83, 1
    %s85 = scalar_select %p82, %s83, %s84
    %p88 = pneg %p82
    %p89 = scmp.eq.s32.totalorder %s8, 1
    %p90 = por %p88, %p89
    %p91 = scmp.ne.s32.totalorder %s83, %s86
    %p92 = scmp.eq.s32.totalorder %s8, 0
    %p93 = por %p91, %p92
    %p94 = scmp.ne.s32.totalorder %s83, %s86
    %p95 = scmp.eq.s32.totalorder %s13, 1
    %p96 = por %p94, %p95
    %p97 = scmp.ne.s32.totalorder %s86, %s87
    %p98 = scmp.eq.s32.totalorder %s13, 0
    %p99 = por %p97, %p98
    %p100 = scmp.ne.s32.totalorder %s86, %s87
    %p101 = scmp.eq.s32.totalorder %s14, 1
    %p102 = por %p100, %p101
    %p104 = scmp.ne.s32.totalorder %s87, %s103
    %p105 = scmp.eq.s32.totalorder %s14, 0
    %p106 = por %p104, %p105
    %p107 = scmp.le.s32.totalorder 1, %s8
    %p108 = scmp.lt.s32.totalorder %s8, 3
    %p109 = pnand %p107, %p108
    %p110 = pneg %p109
    // Predicated region
    $region9: #{_lambda_.1} parent=5 // pred_check
      _
    $region10: #{_lambda_.1} parent=5 // pred_check_branch
      %112 = sbr.rel (%p109) target = $region12
    $region11: #{_lambda_.1} parent=5 // pred_region
      %s113 = ssub.s32 %s8, 1
      // Predicated region
      $region13: #{_lambda_.1} parent=11 // pred_check
        %p114 = pneg %p73
      $region14: #{_lambda_.1} parent=11 // pred_check_branch
        %116 = sbr.rel (%p114) target = $region16
      $region15: #{_lambda_.1} parent=11 // pred_region
        _
      $region16: #{_lambda_.1} parent=11 // pred_fallthru
        _
    $region12: #{_lambda_.1} parent=5 // pred_fallthru
      _
    %p117 = scmp.lt.s32.totalorder %s8, 2
    // Predicated region
    $region17: #{_lambda_.1} parent=5 // pred_check
      %p118 = pneg %p117
    $region18: #{_lambda_.1} parent=5 // pred_check_branch
      %120 = sbr.rel (%p118) target = $region20
    $region19: #{_lambda_.1} parent=5 // pred_region
      // Predicated region
      $region21: #{_lambda_.1} parent=19 // pred_check
        %p121 = pneg %p46
      $region22: #{_lambda_.1} parent=19 // pred_check_branch
        %123 = sbr.rel (%p121) target = $region24
      $region23: #{_lambda_.1} parent=19 // pred_region
        %s124 = sadd.s32 %s15, %s16
        %p125 = scmp.lt.s32.totalorder %s124, 0
        %s126 = scalar_select %p125, %s124, 0
        %p127 = scmp.lt.s32.totalorder %s126, 0
        %s128 = scalar_select %p127, %s126, 0
        %s129 = smul.addr %s128, 6
        %s130 = smul.addr %s129, 8
        %s131 = scalar_lea.vmem %s0, %s130
        %s132 = sadd.s32 %s15, %s16
        %p133 = scmp.lt.s32.totalorder %s132, 0
        %s134 = scalar_select %p133, %s132, 0
      $region24: #{_lambda_.1} parent=19 // pred_fallthru
        _
    $region20: #{_lambda_.1} parent=5 // pred_fallthru
      _
    %p135 = scmp.le.s32.totalorder 1, %s8
    %p136 = scmp.lt.s32.totalorder %s8, 3
    %p137 = pnand %p135, %p136
    %p138 = pneg %p137
    // Predicated region
    $region25: #{_lambda_.1} parent=5 // pred_check
      _
    $region26: #{_lambda_.1} parent=5 // pred_check_branch
      %140 = sbr.rel (%p137) target = $region28
    $region27: #{_lambda_.1} parent=5 // pred_region
      %s141 = ssub.s32 %s8, 1
      %s142 = sadd.s32 %s17, %s18
      %p143 = scmp.lt.s32.totalorder %s142, 0
      %s144 = scalar_select %p143, %s142, 0
      %p145 = scmp.lt.s32.totalorder %s144, 0
      %s146 = scalar_select %p145, %s144, 0
      %s147 = smul.addr %s146, 6
      %s148 = smul.addr %s147, 8
      %s149 = scalar_lea.vmem %s0, %s148
      %p150 = pneg %p52
      %p151 = pneg %p49
      %p152 = pneg %p73
      %p153 = pneg %p70
      %p154 = pneg %p99
      %p155 = pneg %p96
      %p156 = scmp.lt.s32.totalorder %s17, 1
      %s157 = scalar_select %p156, %s17, 1
      %s158 = smul.addr %s157, 2
      %s159 = scalar_lea.vmem %s2, %s158
      %s160 = sadd.s32 %s17, %s18
      %p161 = scmp.lt.s32.totalorder %s160, 0
      %s162 = scalar_select %p161, %s160, 0
      %p163 = scmp.lt.s32.totalorder %s162, 0
      %s164 = scalar_select %p163, %s162, 0
      %s165 = smul.addr %s164, 6
      %s166 = smul.addr %s165, 8
      %s167 = scalar_lea.vmem %s0, %s166
      %s168 = sadd.s32 %s17, %s18
      %p169 = scmp.lt.s32.totalorder %s168, 0
      %s170 = scalar_select %p169, %s168, 0
      %p171 = scmp.lt.s32.totalorder %s17, 1
      %s172 = scalar_select %p171, %s17, 1
      %s173 = smul.addr %s172, 2
      %s174 = scalar_lea.vmem %s2, %s173
      %p175 = scmp.eq.s32.totalorder %s18, 0
      // Predicated region
      $region29: #{_lambda_.1} parent=27 // pred_check
        %p176 = pneg %p175
      $region30: #{_lambda_.1} parent=27 // pred_check_branch
        %178 = sbr.rel (%p176) target = $region32
      $region31: #{_lambda_.1} parent=27 // pred_region
        %179 = vst [vmem:[#allocation2] sm:$0xff] 0.0
        %180 = vst [vmem:[#allocation2 + $0x8] sm:$0xf] 0.0
      $region32: #{_lambda_.1} parent=27 // pred_fallthru
        _
      %s181 = sadd.s32 %s17, %s18
      %s182 = smul.u32 %s181, 8
      %v183 = vlaneseq
      %v184 = vshrl.u32 %v183, 7
      %v185 = vstv %s182
      %v186 = vadd.s32 %v184, %v185
      %v187 = vld [vmem:[%s167] sm:$0xff]
      %v188 = vld [vmem:[%s167 + $0x8] sm:$0xff]
      %v189 = vld [vmem:[%s167 + $0x10] sm:$0xff]
      %v190 = vld [vmem:[%s167 + $0x18] sm:$0xff]
      %v191 = vld [vmem:[%s167 + $0x20] sm:$0xff]
      %v192 = vld [vmem:[%s167 + $0x28] sm:$0xff]
      %v193 = vld [vmem:[%s167 + $0x30] sm:$0xff]
      %v194 = vld [vmem:[%s167 + $0x38] sm:$0xff]
      %v195 = vld [vmem:[%s167 + $0x40] sm:$0xff]
      %v196 = vld [vmem:[%s167 + $0x48] sm:$0xff]
      %v197 = vld [vmem:[%s167 + $0x50] sm:$0xff]
      %v198 = vld [vmem:[%s167 + $0x58] sm:$0xff]
      %vm199 = vcmp.lt.s32.totalorder %v186, 8
      %v200 = vsel %vm199, 1, 0
      %vm201 = vcmp.eq.s32.totalorder %v200, 1
      %v202 = vsel %vm201, %v187, 0.0
      %v203 = vsel %vm201, %v188, 0.0
      %v204 = vsel %vm201, %v189, 0.0
      %v205 = vsel %vm201, %v190, 0.0
      %v206 = vsel %vm201, %v191, 0.0
      %v207 = vsel %vm201, %v192, 0.0
      %v208 = vsel %vm201, %v193, 0.0
      %v209 = vsel %vm201, %v194, 0.0
      %v210 = vsel %vm201, %v195, 0.0
      %v211 = vsel %vm201, %v196, 0.0
      %v212 = vsel %vm201, %v197, 0.0
      %v213 = vsel %vm201, %v198, 0.0
      %v214 = vld [vmem:[#allocation2] sm:$0xff]
      %v215 = vld [vmem:[#allocation2 + $0x8] sm:$0xf]
      %v216 = vrot.slane %v202, 4
      %v217 = vadd.f32 %v202, %v216
      %v218 = vrot.slane %v217, 2
      %v219 = vadd.f32 %v217, %v218
      %v220 = vrot.slane %v219, 1
      %v221 = vadd.f32 %v219, %v220
      %v222 = vrot.slane %v203, 4
      %v223 = vadd.f32 %v203, %v222
      %v224 = vrot.slane %v223, 2
      %v225 = vadd.f32 %v223, %v224
      %v226 = vrot.slane %v225, 1
      %v227 = vadd.f32 %v225, %v226
      %v228 = vrot.slane %v204, 4
      %v229 = vadd.f32 %v204, %v228
      %v230 = vrot.slane %v229, 2
      %v231 = vadd.f32 %v229, %v230
      %v232 = vrot.slane %v231, 1
      %v233 = vadd.f32 %v231, %v232
      %v234 = vrot.slane %v205, 4
      %v235 = vadd.f32 %v205, %v234
      %v236 = vrot.slane %v235, 2
      %v237 = vadd.f32 %v235, %v236
      %v238 = vrot.slane %v237, 1
      %v239 = vadd.f32 %v237, %v238
      %v240 = vrot.slane %v206, 4
      %v241 = vadd.f32 %v206, %v240
      %v242 = vrot.slane %v241, 2
      %v243 = vadd.f32 %v241, %v242
      %v244 = vrot.slane %v243, 1
      %v245 = vadd.f32 %v243, %v244
      %v246 = vrot.slane %v207, 4
      %v247 = vadd.f32 %v207, %v246
      %v248 = vrot.slane %v247, 2
      %v249 = vadd.f32 %v247, %v248
      %v250 = vrot.slane %v249, 1
      %v251 = vadd.f32 %v249, %v250
      %v252 = vrot.slane %v208, 4
      %v253 = vadd.f32 %v208, %v252
      %v254 = vrot.slane %v253, 2
      %v255 = vadd.f32 %v253, %v254
      %v256 = vrot.slane %v255, 1
      %v257 = vadd.f32 %v255, %v256
      %v258 = vrot.slane %v209, 4
      %v259 = vadd.f32 %v209, %v258
      %v260 = vrot.slane %v259, 2
      %v261 = vadd.f32 %v259, %v260
      %v262 = vrot.slane %v261, 1
      %v263 = vadd.f32 %v261, %v262
      %v264 = vrot.slane %v210, 4
      %v265 = vadd.f32 %v210, %v264
      %v266 = vrot.slane %v265, 2
      %v267 = vadd.f32 %v265, %v266
      %v268 = vrot.slane %v267, 1
      %v269 = vadd.f32 %v267, %v268
      %v270 = vrot.slane %v211, 4
      %v271 = vadd.f32 %v211, %v270
      %v272 = vrot.slane %v271, 2
      %v273 = vadd.f32 %v271, %v272
      %v274 = vrot.slane %v273, 1
      %v275 = vadd.f32 %v273, %v274
      %v276 = vrot.slane %v212, 4
      %v277 = vadd.f32 %v212, %v276
      %v278 = vrot.slane %v277, 2
      %v279 = vadd.f32 %v277, %v278
      %v280 = vrot.slane %v279, 1
      %v281 = vadd.f32 %v279, %v280
      %v282 = vrot.slane %v213, 4
      %v283 = vadd.f32 %v213, %v282
      %v284 = vrot.slane %v283, 2
      %v285 = vadd.f32 %v283, %v284
      %v286 = vrot.slane %v285, 1
      %v287 = vadd.f32 %v285, %v286
      %v300 = vcombine.low %v221, %v227
      %v301 = vcombine.low %v233, %v239
      %v303 = vunpack.c.l.s4 1983009808
      %v304 = vunpack.c.0.s8 %v303
      %v305 = vlaneseq
      %v306 = vshrl.u32 %v305, 7
      %v307 = vsub.s32 %v304, %v306
      %v308 = vrot.slane %v300, %v307
      %v310 = vunpack.c.l.s4 1983009808
      %v311 = vunpack.c.0.s8 %v310
      %v312 = vlaneseq
      %v313 = vshrl.u32 %v312, 7
      %v314 = vsub.s32 %v311, %v313
      %v315 = vrot.slane %v301, %v314
      %v316 = vcombine.low %v308, %v315
      %v317 = vcombine.low %v245, %v251
      %v319 = vunpack.c.l.s4 1983009808
      %v320 = vunpack.c.0.s8 %v319
      %v321 = vlaneseq
      %v322 = vshrl.u32 %v321, 7
      %v323 = vsub.s32 %v320, %v322
      %v324 = vrot.slane %v317, %v323
      %v325 = vcombine.low %v257, %v263
      %v326 = vcombine.low %v269, %v275
      %v328 = vunpack.c.l.s4 1983009808
      %v329 = vunpack.c.0.s8 %v328
      %v330 = vlaneseq
      %v331 = vshrl.u32 %v330, 7
      %v332 = vsub.s32 %v329, %v331
      %v333 = vrot.slane %v325, %v332
      %v335 = vunpack.c.l.s4 1983009808
      %v336 = vunpack.c.0.s8 %v335
      %v337 = vlaneseq
      %v338 = vshrl.u32 %v337, 7
      %v339 = vsub.s32 %v336, %v338
      %v340 = vrot.slane %v326, %v339
      %v341 = vcombine.low %v333, %v340
      %v342 = vcombine.low %v281, %v287
      %v344 = vunpack.c.l.s4 1983009808
      %v345 = vunpack.c.0.s8 %v344
      %v346 = vlaneseq
      %v347 = vshrl.u32 %v346, 7
      %v348 = vsub.s32 %v345, %v347
      %v349 = vrot.slane %v342, %v348
      %vm350 = vcmask 1044484
      %v351 = vsel %vm350, %v316, %v316
      %vm352 = vcmask 1046534
      %v353 = vsel %vm352, %v316, %v351
      %v354 = vrot.slane %v341, 7
      %vm355 = vcmask 1041409
      %v356 = vsel %vm355, %v354, %v353
      %vm357 = vcmask 1043459
      %v358 = vsel %vm357, %v354, %v356
      %vm359 = vcmask 1045509
      %v360 = vsel %vm359, %v354, %v358
      %vm361 = vcmask 1047559
      %v362 = vsel %vm361, %v354, %v360
      %v363 = vsel %vm350, %v324, %v324
      %v364 = vsel %vm352, %v324, %v363
      %v365 = vrot.slane %v349, 7
      %v366 = vsel %vm355, %v365, %v364
      %v367 = vsel %vm357, %v365, %v366
      %v368 = vsel %vm359, %v365, %v367
      %v369 = vsel %vm361, %v365, %v368
      %v372 = vadd.f32 %v214, %v362
      %v373 = vadd.f32 %v215, %v369
      %374 = vst [vmem:[#allocation2] sm:$0xff] %v372
      %375 = vst [vmem:[#allocation2 + $0x8] sm:$0xf] %v373
      // Predicated region
      $region33: #{_lambda_.1} parent=27 // pred_check
        %p376 = pneg %p175
      $region34: #{_lambda_.1} parent=27 // pred_check_branch
        %378 = sbr.rel (%p376) target = $region36
      $region35: #{_lambda_.1} parent=27 // pred_region
        %v379 = vld [vmem:[%s1] sm:$0x3f]
        %v380 = vld [vmem:[#allocation2] sm:$0xff]
        %v381 = vld [vmem:[#allocation2 + $0x8] sm:$0xf]
        %v383 = vlaneseq
        %v384 = vshrl.u32 %v383, 7
        %v385 = vsub.s32 0, %v384
        %v386 = vrot.slane %v379, %v385
        %v387 = vlaneseq
        %v388 = vshrl.u32 %v387, 7
        %v389 = vsub.s32 1, %v388
        %v390 = vrot.slane %v379, %v389
        %v391 = vlaneseq
        %v392 = vshrl.u32 %v391, 7
        %v393 = vsub.s32 2, %v392
        %v394 = vrot.slane %v379, %v393
        %v395 = vlaneseq
        %v396 = vshrl.u32 %v395, 7
        %v397 = vsub.s32 3, %v396
        %v398 = vrot.slane %v379, %v397
        %v399 = vlaneseq
        %v400 = vshrl.u32 %v399, 7
        %v401 = vsub.s32 4, %v400
        %v402 = vrot.slane %v379, %v401
        %v403 = vlaneseq
        %v404 = vshrl.u32 %v403, 7
        %v405 = vsub.s32 5, %v404
        %v406 = vrot.slane %v379, %v405
        %v407 = vcombine.low %v386, %v390
        %v408 = vcombine.low %v394, %v398
        %v410 = vunpack.c.l.s4 1983009808
        %v411 = vunpack.c.0.s8 %v410
        %v412 = vlaneseq
        %v413 = vshrl.u32 %v412, 7
        %v414 = vsub.s32 %v411, %v413
        %v415 = vrot.slane %v407, %v414
        %v417 = vunpack.c.l.s4 1983009808
        %v418 = vunpack.c.0.s8 %v417
        %v419 = vlaneseq
        %v420 = vshrl.u32 %v419, 7
        %v421 = vsub.s32 %v418, %v420
        %v422 = vrot.slane %v408, %v421
        %v423 = vcombine.low %v415, %v422
        %v424 = vcombine.low %v402, %v406
        %v426 = vunpack.c.l.s4 1983009808
        %v427 = vunpack.c.0.s8 %v426
        %v428 = vlaneseq
        %v429 = vshrl.u32 %v428, 7
        %v430 = vsub.s32 %v427, %v429
        %v431 = vrot.slane %v424, %v430
        %v434 = vmul.f32 %v380, %v423
        %v435 = vmul.f32 %v381, %v431
        %v438 = vcombine.high %v434, %v434
        %v440 = vunpack.c.l.s4 1983009808
        %v441 = vunpack.c.0.s8 %v440
        %v442 = vlaneseq
        %v443 = vshrl.u32 %v442, 7
        %v444 = vsub.s32 %v441, %v443
        %v445 = vrot.slane %v434, %v444
        %v447 = vunpack.c.l.s4 1983009808
        %v448 = vunpack.c.0.s8 %v447
        %v449 = vlaneseq
        %v450 = vshrl.u32 %v449, 7
        %v451 = vsub.s32 %v448, %v450
        %v452 = vrot.slane %v438, %v451
        %v453 = vcombine.high %v445, %v445
        %v454 = vcombine.high %v452, %v452
        %v456 = vunpack.c.l.s4 1983009808
        %v457 = vunpack.c.0.s8 %v456
        %v458 = vlaneseq
        %v459 = vshrl.u32 %v458, 7
        %v460 = vsub.s32 %v457, %v459
        %v461 = vrot.slane %v435, %v460
        %v462 = vcombine.high %v461, %v461
        %vm469 = vcmask 1041408
        %v470 = vsel %vm469, %v445, 0.0
        %v471 = vsel %vm469, %v453, 0.0
        %v472 = vadd.f32 %v470, %v471
        %v473 = vsel %vm469, %v452, 0.0
        %v474 = vadd.f32 %v472, %v473
        %v475 = vsel %vm469, %v454, 0.0
        %v476 = vadd.f32 %v474, %v475
        %v477 = vsel %vm469, %v461, 0.0
        %v478 = vadd.f32 %v476, %v477
        %v479 = vsel %vm469, %v462, 0.0
        %v480 = vadd.f32 %v478, %v479
        %481 = vadd.xlane.f32.xlu0 %v480
        %v482 = vpop.xlane.xlu0 %481
        %v483 = vmul.f32 %v482, 0.125
        %vm484 = vcmask 1024
        %485 = vst.msk [vmem:[%s174] sm:$0x3] %vm484, %v483
      $region36: #{_lambda_.1} parent=27 // pred_fallthru
        _
      %p486 = scmp.lt.s32.totalorder %s17, 1
      %s487 = scalar_select %p486, %s17, 1
      %s488 = smul.addr %s487, 2
      %s489 = scalar_lea.vmem %s2, %s488
      // Predicated region
      $region37: #{_lambda_.1} parent=27 // pred_check
        %p490 = pneg %p96
      $region38: #{_lambda_.1} parent=27 // pred_check_branch
        %492 = sbr.rel (%p490) target = $region40
      $region39: #{_lambda_.1} parent=27 // pred_region
        _
      $region40: #{_lambda_.1} parent=27 // pred_fallthru
        _
    $region28: #{_lambda_.1} parent=5 // pred_fallthru
      _
    %p493 = scmp.le.s32.totalorder 2, %s8
    // Predicated region
    $region41: #{_lambda_.1} parent=5 // pred_check
      %p494 = pneg %p493
    $region42: #{_lambda_.1} parent=5 // pred_check_branch
      %496 = sbr.rel (%p494) target = $region44
    $region43: #{_lambda_.1} parent=5 // pred_region
      %s497 = ssub.s32 %s8, 2
      // Predicated region
      $region45: #{_lambda_.1} parent=43 // pred_check
        %p498 = pneg %p102
      $region46: #{_lambda_.1} parent=43 // pred_check_branch
        %500 = sbr.rel (%p498) target = $region48
      $region47: #{_lambda_.1} parent=43 // pred_region
        %p501 = scmp.lt.s32.totalorder %s19, 1
        %s502 = scalar_select %p501, %s19, 1
        %s503 = smul.addr %s502, 2
        %s504 = scalar_lea.vmem %s2, %s503
      $region48: #{_lambda_.1} parent=43 // pred_fallthru
        _
    $region44: #{_lambda_.1} parent=5 // pred_fallthru
      _
  $region6: #{_lambda_.1} parent=0 // loop_footer
    %s12 = sadd.s32 1, %s8
  $region7: #{_lambda_.1} parent=0 // loop_footer_branch
    %7 = sbr.rel target = $region3
  $region8: #{_lambda_.1} parent=0 // loop_exit
    _

</llo_original>
